<compile_context>
chip_gen: v5e
topology: v5e:2x2
jax: 0.10.0
libtpu: 0.0.40
codegen_flags: <defaults>
</compile_context>

<pallas_src>
import functools

import jax
import jax.numpy as jnp
from jax import lax
from jax.experimental import pallas as pl
from jax.experimental.pallas import tpu as pltpu


def _ce_diag_kernel(x_ref, o_ref, acc_ref, *, inv_batch):
    i = pl.program_id(0)
    n_blk = pl.num_programs(0)

    @pl.when(i == 0)
    def _init():
        acc_ref[...] = jnp.zeros_like(acc_ref)

    x = x_ref[...].astype(jnp.float32)          # [TB, N] row block of logits
    tb, n = x.shape

    # Positive logit per row: column index == global row index (= i*TB + row).
    rows = lax.broadcasted_iota(jnp.int32, (tb, n), 0)
    cols = lax.broadcasted_iota(jnp.int32, (tb, n), 1)
    diag_mask = cols == rows + i * tb
    pos = jnp.sum(jnp.where(diag_mask, x, 0.0), axis=1, keepdims=True)   # [TB, 1]

    # Row-wise log-sum-exp with max shift (numerically safe).
    m = jnp.max(x, axis=1, keepdims=True)                                # [TB, 1]
    sum_exp = jnp.sum(jnp.exp(x - m), axis=1, keepdims=True)             # [TB, 1]
    lse = m + jnp.log(sum_exp)                                           # [TB, 1]

    # loss_i = logsumexp_i - x[i, i]; accumulate the block's row sum.
    acc_ref[...] += jnp.sum(lse - pos, keepdims=True)                    # (1, 1)

    @pl.when(i == n_blk - 1)
    def _finalize():
        o_ref[...] = acc_ref[...] * inv_batch


def infonce_gcc_ns(x, *, block_rows=256):
    """x: logits with shape [bsz, ...] (squeezed to [bsz, n_cols]); returns scalar loss."""
    bsz = x.shape[0]
    x2 = jnp.squeeze(x)
    if x2.ndim == 1:                        # degenerate single-row case after squeeze
        x2 = x2.reshape(bsz, -1)
    assert x2.ndim == 2 and x2.shape[0] == bsz, x2.shape
    B, N = x2.shape

    # Row tile: largest block <= block_rows that divides B and is a multiple of
    # 8 (f32 sublane tiling); otherwise fall back to the full batch.
    tb = B
    if B > block_rows:
        tb = block_rows
        while B % tb != 0 and tb > 8:
            tb //= 2
        if B % tb != 0 or tb % 8 != 0:
            tb = B
    n_blk = B // tb

    kernel = functools.partial(_ce_diag_kernel, inv_batch=float(1.0 / B))

    out = pl.pallas_call(
        kernel,
        out_shape=jax.ShapeDtypeStruct((1, 1), jnp.float32),
        grid_spec=pltpu.PrefetchScalarGridSpec(
            num_scalar_prefetch=0,
            grid=(n_blk,),
            in_specs=[
                pl.BlockSpec((tb, N), lambda i: (i, 0)),   # row block, full columns
            ],
            out_specs=pl.BlockSpec((1, 1), lambda i: (0, 0)),
            scratch_shapes=[pltpu.VMEM((1, 1), jnp.float32)],
        ),
        compiler_params=pltpu.CompilerParams(
            # Scalar accumulator is shared across row blocks -> reduction axis.
            dimension_semantics=("arbitrary",),
        ),
    )(x2)
    return out[0, 0]


def infonce_gcc_ns_ref(x):
    """Pure-JAX reference: CrossEntropyLoss(x.squeeze(), arange(bsz))."""
    bsz = x.shape[0]
    x2 = jnp.squeeze(x).astype(jnp.float32)
    if x2.ndim == 1:
        x2 = x2.reshape(bsz, -1)
    lse = jax.scipy.special.logsumexp(x2, axis=1)
    pos = x2[jnp.arange(bsz), jnp.arange(bsz)]
    return jnp.mean(lse - pos)


if __name__ == "__main__":
    key = jax.random.PRNGKey(0)
    k1, k2 = jax.random.split(key)

    # Case 1: small [bsz, 1, bsz] logits (exercises the .squeeze()), bsz = 8.
    B = 8
    x = jax.random.normal(k1, (B, 1, B), dtype=jnp.float32) * 3.0
    loss = infonce_gcc_ns(x)
    jax.block_until_ready(loss)
    ref = infonce_gcc_ns_ref(x)
    assert jnp.allclose(loss, ref, rtol=1e-5, atol=1e-5), (loss, ref)

    # Case 2: exercise the row-block grid + accumulator path (B=64, tb=16 -> 4 steps).
    B2 = 64
    x2 = jax.random.normal(k2, (B2, B2), dtype=jnp.float32) * 3.0
    loss2 = infonce_gcc_ns(x2, block_rows=16)
    jax.block_until_ready(loss2)
    ref2 = infonce_gcc_ns_ref(x2)
    assert jnp.allclose(loss2, ref2, rtol=1e-5, atol=1e-5), (loss2, ref2)

    print("KERNEL_OK")
</pallas_src>

<mosaic_0001>
module attributes {stable_mosaic.version = 11 : i64} {
  func.func @_ce_diag_kernel(%arg0: i32, %arg1: memref<8x8xf32, #tpu.memory_space<vmem>>, %arg2: memref<1x1xf32, #tpu.memory_space<vmem>>, %arg3: memref<1x1xf32, #tpu.memory_space<vmem>>) attributes {dimension_semantics = [#tpu.dimension_semantics<arbitrary>], iteration_bounds = array<i64: 1>, scalar_prefetch = 0 : i64, scratch_operands = 1 : i64, tpu.core_type = #tpu.core_type<tc>, window_params = [{transform_indices = @transform_0, window_bounds = array<i64: 8, 8>}, {pipeline_mode = #tpu.pipeline_mode<synchronous>, transform_indices = @transform_1, window_bounds = array<i64: 1, 1>}]} {
    %c0_i32 = arith.constant 0 : i32
    %0 = arith.cmpi eq, %arg0, %c0_i32 : i32
    %1 = arith.extui %0 : i1 to i32
    %c0_i32_0 = arith.constant 0 : i32
    %2 = arith.cmpi ne, %1, %c0_i32_0 : i32
    scf.if %2 {
      %cst_12 = arith.constant 0.000000e+00 : f32
      %35 = vector.broadcast %cst_12 : f32 to vector<1x1xf32>
      %c0_13 = arith.constant 0 : index
      %c0_14 = arith.constant 0 : index
      %36 = vector.load %arg3[%c0_13, %c0_14] : memref<1x1xf32, #tpu.memory_space<vmem>>, vector<1x1xf32>
      tpu.vector_store %arg3[%c0_13, %c0_14], %35 {strides = array<i32>} : memref<1x1xf32, #tpu.memory_space<vmem>>, vector<1x1xf32>,
    } else {
    }
    %c0 = arith.constant 0 : index
    %c0_1 = arith.constant 0 : index
    %3 = vector.load %arg1[%c0, %c0_1] : memref<8x8xf32, #tpu.memory_space<vmem>>, vector<8x8xf32>
    %4 = tpu.iota {dimensions = array<i32: 0>} : vector<8x8xi32>
    %5 = tpu.iota {dimensions = array<i32: 1>} : vector<8x8xi32>
    %c8_i32 = arith.constant 8 : i32
    %6 = arith.muli %arg0, %c8_i32 : i32
    %7 = vector.broadcast %6 : i32 to vector<8x8xi32>
    %8 = arith.addi %4, %7 : vector<8x8xi32>
    %9 = arith.cmpi eq, %5, %8 : vector<8x8xi32>
    %cst = arith.constant 0.000000e+00 : f32
    %10 = vector.broadcast %cst : f32 to vector<8x8xf32>
    %11 = arith.select %9, %3, %10 : vector<8x8xi1>, vector<8x8xf32>
    %cst_2 = arith.constant dense<0.000000e+00> : vector<8xf32>
    %12 = vector.multi_reduction <add>, %11, %cst_2 [1] : vector<8x8xf32> to vector<8xf32>
    %13 = vector.shape_cast %12 : vector<8xf32> to vector<8x1xf32>
    %cst_3 = arith.constant dense<0xFF800000> : vector<8xf32>
    %14 = vector.multi_reduction <maximumf>, %3, %cst_3 [1] : vector<8x8xf32> to vector<8xf32>
    %15 = vector.shape_cast %14 : vector<8xf32> to vector<8x1xf32>
    %16 = vector.broadcast %15 : vector<8x1xf32> to vector<8x8xf32>
    %17 = arith.subf %3, %16 : vector<8x8xf32>
    %18 = math.exp %17 : vector<8x8xf32>
    %cst_4 = arith.constant dense<0.000000e+00> : vector<8xf32>
    %19 = vector.multi_reduction <add>, %18, %cst_4 [1] : vector<8x8xf32> to vector<8xf32>
    %20 = vector.shape_cast %19 : vector<8xf32> to vector<8x1xf32>
    %21 = math.log %20 : vector<8x1xf32>
    %22 = arith.addf %15, %21 : vector<8x1xf32>
    %c0_5 = arith.constant 0 : index
    %c0_6 = arith.constant 0 : index
    %23 = vector.load %arg3[%c0_5, %c0_6] : memref<1x1xf32, #tpu.memory_space<vmem>>, vector<1x1xf32>
    %24 = arith.subf %22, %13 : vector<8x1xf32>
    %25 = vector.shape_cast %24 : vector<8x1xf32> to vector<1x8x1xf32>
    %cst_7 = arith.constant dense<0.000000e+00> : vector<1xf32>
    %26 = vector.multi_reduction <add>, %25, %cst_7 [1, 2] : vector<1x8x1xf32> to vector<1xf32>
    %27 = vector.shape_cast %26 : vector<1xf32> to vector<1x1x1xf32>
    %28 = vector.extract %27[0, 0, 0] : f32 from vector<1x1x1xf32>
    %29 = vector.broadcast %28 : f32 to vector<1x1xf32>
    %30 = arith.addf %23, %29 : vector<1x1xf32>
    %c0_8 = arith.constant 0 : index
    %c0_9 = arith.constant 0 : index
    %31 = vector.load %arg3[%c0_8, %c0_9] : memref<1x1xf32, #tpu.memory_space<vmem>>, vector<1x1xf32>
    tpu.vector_store %arg3[%c0_8, %c0_9], %30 {strides = array<i32>} : memref<1x1xf32, #tpu.memory_space<vmem>>, vector<1x1xf32>,
    %c0_i32_10 = arith.constant 0 : i32
    %32 = arith.cmpi eq, %arg0, %c0_i32_10 : i32
    %33 = arith.extui %32 : i1 to i32
    %c0_i32_11 = arith.constant 0 : i32
    %34 = arith.cmpi ne, %33, %c0_i32_11 : i32
    scf.if %34 {
      %c0_12 = arith.constant 0 : index
      %c0_13 = arith.constant 0 : index
      %35 = vector.load %arg3[%c0_12, %c0_13] : memref<1x1xf32, #tpu.memory_space<vmem>>, vector<1x1xf32>
      %cst_14 = arith.constant 1.250000e-01 : f32
      %36 = vector.broadcast %cst_14 : f32 to vector<1x1xf32>
      %37 = arith.mulf %35, %36 : vector<1x1xf32>
      %c0_15 = arith.constant 0 : index
      %c0_16 = arith.constant 0 : index
      %38 = vector.load %arg2[%c0_15, %c0_16] : memref<1x1xf32, #tpu.memory_space<vmem>>, vector<1x1xf32>
      tpu.vector_store %arg2[%c0_15, %c0_16], %37 {strides = array<i32>} : memref<1x1xf32, #tpu.memory_space<vmem>>, vector<1x1xf32>,
    } else {
    }
    return
  }
  func.func @transform_0(%arg0: i32) -> (i32, i32) {
    %c0_i32 = arith.constant 0 : i32
    %c0_i32_0 = arith.constant 0 : i32
    return %arg0, %c0_i32 : i32, i32
  }
  func.func @transform_1(%arg0: i32) -> (i32, i32) {
    %c0_i32 = arith.constant 0 : i32
    %c0_i32_0 = arith.constant 0 : i32
    %c0_i32_1 = arith.constant 0 : i32
    return %c0_i32, %c0_i32_0 : i32, i32
  }
}

</mosaic_0001>

<llo_original>
// kernel: tpu_custom_call.1
$region0: #{tpu_custom_call.1}
  #allocation0 [shape = 'u32[]', space=smem, size = 0x4, offset = 0x4, fixed_abs, tag = 'smem constant byte address 0x4 - core index']
  #allocation1 [shape = 'u32[72,128]{1,0:T(1,128)}', space=vmem, size = 0x9000, scoped, tag = 'internal scratch']
  #allocation2 [shape = 'f32[1,1]{1,0:T(1,128)}', space=vmem, size = 0x200, scoped, tag = 'scratch operand']
  %s0 = inlined_call_operand.hbm [shape: f32[8,8], index: 0, kind: input, shape index: {}]
  %s1 = inlined_call_operand.hbm [shape: f32[1,1], index: 1, kind: output, shape index: {}]
  %s2 = sld [smem:[#allocation0]]
  $region26: #{tpu_custom_call.1} parent=0
    _
  %s4 = ssub.s32 1, %s2
  %s5 = scalar_select 0, %s4, %s2
  $region1: #{tpu_custom_call.1} parent=0
    #allocation3 [shape = 'u8[4096]{0}', space=vmem, size = 0x1000, scoped, tag = 'input window, operand 0, single buffered']
    #allocation4 [shape = 's32[1]{0}', space=sflag, size = 0x4, scoped, tag = 'scoped memory for tpu_custom_call.1']
    #allocation5 [shape = 's32[1]{0}', space=sflag, size = 0x4, scoped, tag = 'scoped memory for tpu_custom_call.1']
    #allocation6 [shape = 'u8[512]{0}', space=vmem, size = 0x400, scoped, tag = 'output window, operand 0, single buffered']
    %6 = vsyncpa [#allocation4], 0
    %7 = vsyncpa [#allocation5], 0
    // Predicated region
    $region2: #{tpu_custom_call.1} parent=1 // pred_check
      _
    $region3: #{tpu_custom_call.1} parent=1 // pred_check_branch
      %9 = sbr.rel (0) target = $region5
    $region4: #{tpu_custom_call.1} parent=1 // pred_region
      %11 = vsyncadd [#allocation4], 0
      %s13 = sshll.u32 %s0, 4
      %s14 = int_to_ptr.hbm [resolvable:$true] %s13
      %s15 = sshll.u32 [#allocation3], 4
      %s16 = int_to_ptr.vmem [resolvable:$true] %s15
      %18 = dma.hbm_to_vmem [thread:$0]  %s14, 128, %s16, [#allocation4]
    $region5: #{tpu_custom_call.1} parent=1 // pred_fallthru
      _
    // Predicated region
    $region6: #{tpu_custom_call.1} parent=1 // pred_check
      _
    $region7: #{tpu_custom_call.1} parent=1 // pred_check_branch
      %20 = sbr.rel (0) target = $region9
    $region8: #{tpu_custom_call.1} parent=1 // pred_region
      %22 = dma.done [#allocation4], 128
    $region9: #{tpu_custom_call.1} parent=1 // pred_fallthru
      _
    %p23 = scmp.eq.s32.totalorder 0, 0
    // Predicated region
    $region10: #{tpu_custom_call.1} parent=1 // pred_check
      %p24 = pneg %p23
    $region11: #{tpu_custom_call.1} parent=1 // pred_check_branch
      %26 = sbr.rel (%p24) target = $region13
    $region12: #{tpu_custom_call.1} parent=1 // pred_region
      %vm27 = vcmask 0
      %28 = vst.msk [vmem:[#allocation2] sm:$0x1] %vm27, 0.0
    $region13: #{tpu_custom_call.1} parent=1 // pred_fallthru
      _
    %v29 = vld [vmem:[#allocation3] sm:$0xff]
    %v30 = vlaneseq
    %v31 = vshrl.u32 %v30, 7
    %v32 = vlaneseq
    %v33 = vand.u32 %v32, 127
    %s34 = smul.u32 0, 8
    %v35 = vstv %s34
    %v36 = vadd.s32 %v31, %v35
    %vm37 = vcmp.eq.s32.totalorder %v33, %v36
    %v38 = vsel %vm37, %v29, 0.0
    %vm39 = vcmask 64512
    %v40 = vsel %vm39, %v38, 0.0
    %41 = vadd.xlane.f32.xlu0 %v40
    %v42 = vpop.xlane.xlu0 %41
    %v43 = vsel %vm39, %v29, -inf
    %44 = vmax.xlane.f32.xlu0 %v43
    %v45 = vpop.xlane.xlu0 %44
    %v46 = vsub.f32 %v29, %v45
    %v47 = vmul.f32 %v46, 1.442695
    %v48 = vpow.pop %v47
    %v49 = vsel %vm39, %v48, 0.0
    %50 = vadd.xlane.f32.xlu0 %v49
    %v51 = vpop.xlane.xlu0 %50
    %v52 = vlog2.pop %v51
    %v53 = vmul.f32 %v52, 0.6931472
    %v54 = vadd.f32 %v45, %v53
    %v55 = vld [vmem:[#allocation2] sm:$0x1]
    %v56 = vsub.f32 %v54, %v42
    %vm57 = vcmask 7168
    %v58 = vsel %vm57, %v56, 0.0
    %59 = vadd.xlane.f32.xlu0 %v58
    %v60 = vpop.xlane.xlu0 %59
    %v61 = vrot.slane %v60, 4
    %v62 = vadd.f32 %v60, %v61
    %v63 = vrot.slane %v62, 2
    %v64 = vadd.f32 %v62, %v63
    %v65 = vrot.slane %v64, 1
    %v66 = vadd.f32 %v64, %v65
    %s67 = vtos %v66
    %v68 = vstv %s67
    %v69 = vadd.f32 %v55, %v68
    %vm70 = vcmask 0
    %71 = vst.msk [vmem:[#allocation2] sm:$0x1] %vm70, %v69
    // Predicated region
    $region14: #{tpu_custom_call.1} parent=1 // pred_check
      %p72 = pneg %p23
    $region15: #{tpu_custom_call.1} parent=1 // pred_check_branch
      %74 = sbr.rel (%p72) target = $region17
    $region16: #{tpu_custom_call.1} parent=1 // pred_region
      %v75 = vld [vmem:[#allocation2] sm:$0x1]
      %v76 = vmul.f32 %v75, 0.125
      %77 = vst.msk [vmem:[#allocation6] sm:$0x1] %vm70, %v76
    $region17: #{tpu_custom_call.1} parent=1 // pred_fallthru
      _
    // Predicated region
    $region18: #{tpu_custom_call.1} parent=1 // pred_check
      _
    $region19: #{tpu_custom_call.1} parent=1 // pred_check_branch
      %79 = sbr.rel (0) target = $region21
    $region20: #{tpu_custom_call.1} parent=1 // pred_region
      %81 = vsyncadd [#allocation5], 0
      %s83 = sshll.u32 [#allocation6], 4
      %s84 = int_to_ptr.vmem [resolvable:$true] %s83
      %s85 = sshll.u32 %s1, 4
      %s86 = int_to_ptr.hbm [resolvable:$true] %s85
      %88 = dma.vmem_to_hbm [thread:$0]  %s84, 16, %s86, [#allocation5]
    $region21: #{tpu_custom_call.1} parent=1 // pred_fallthru
      _
    // Predicated region
    $region22: #{tpu_custom_call.1} parent=1 // pred_check
      _
    $region23: #{tpu_custom_call.1} parent=1 // pred_check_branch
      %90 = sbr.rel (0) target = $region25
    $region24: #{tpu_custom_call.1} parent=1 // pred_region
      %92 = dma.done [#allocation5], 16
    $region25: #{tpu_custom_call.1} parent=1 // pred_fallthru
      _
    %93 = vsyncpa [#allocation4], 1
    %94 = vsyncpa [#allocation5], 1

</llo_original>
